<compile_context>
chip_gen: v5e
topology: v5e:2x2
jax: 0.10.0
libtpu: 0.0.40
codegen_flags: <defaults>
</compile_context>

<pallas_src>
import functools

import jax
import jax.numpy as jnp
from jax import lax
from jax.experimental import pallas as pl
from jax.experimental.pallas import tpu as pltpu


def _gradient_1d_kernel(x_ref, o_ref, *, h, w):
    # x_ref / o_ref: (TB, H*W) tile; each row is one flattened (H, W) image slice.
    x = x_ref[...]
    l = h * w

    # Flattened index j = hh*W + ww.
    # Right neighbor (ww+1) lives at j+1; bottom neighbor (hh+1) lives at j+W.
    # pltpu.roll requires non-negative shifts, and roll-by-(l-s) == roll-by-(-s)
    # (np.roll semantics: result[j] = x[(j - shift) mod l]).
    r = pltpu.roll(x, shift=l - 1, axis=1)  # r[:, j] = x[:, (j + 1) % l]
    b = pltpu.roll(x, shift=l - w, axis=1)  # b[:, j] = x[:, (j + w) % l]

    dx = jnp.abs(r - x)
    dy = jnp.abs(b - x)

    # Masks built once per block at (1, L) and broadcast along the sublane axis:
    #  - dx is zeroed on the last column of every image (ww == W-1), which also
    #    kills the wrap-around across packed rows / images.
    #  - dy is zeroed on the last row of every image (hh == H-1).
    lane = lax.broadcasted_iota(jnp.int32, (1, l), 1)
    keep_dx = ((lane % w) != (w - 1)).astype(x.dtype)
    keep_dy = (lane < (h - 1) * w).astype(x.dtype)

    o_ref[...] = dx * keep_dx + dy * keep_dy


def gradient_1d(img):
    """img: (N, C, H, W) array. Returns |dx| + |dy| gradient magnitude (same shape/dtype)."""
    N, C, H, W = img.shape
    NC = N * C
    L = H * W
    itemsize = jnp.dtype(img.dtype).itemsize

    # Pure metadata reshape (contiguous): no HBM traffic, no transpose.
    x = img.reshape(NC, L)

    # Mem-bound kernel: pick ~4 MiB blocks so 2 buffers x (in + out) stays well
    # under the default scoped VMEM on v5e/v6e/v7x while sitting on the flat
    # part of the HBM roofline curve.
    target_bytes = 4 * 1024 * 1024
    tb = max(1, target_bytes // (L * itemsize))
    if tb >= NC:
        tb = NC  # block dim equals full array dim -> (8,128) rule satisfied
    else:
        tb = max(8, (tb // 8) * 8)  # keep sublane dim a multiple of 8
        tb = min(tb, NC)

    grid = (pl.cdiv(NC, tb),)
    kernel = functools.partial(_gradient_1d_kernel, h=H, w=W)

    out = pl.pallas_call(
        kernel,
        out_shape=jax.ShapeDtypeStruct((NC, L), img.dtype),
        grid_spec=pltpu.PrefetchScalarGridSpec(
            num_scalar_prefetch=0,
            grid=grid,
            in_specs=[pl.BlockSpec((tb, L), lambda i: (i, 0))],
            out_specs=pl.BlockSpec((tb, L), lambda i: (i, 0)),
        ),
        compiler_params=pltpu.CompilerParams(
            # Batched slice axis is independent -> shards across v7x's 2 TCs;
            # measured neutral on single-TC v5e/v6e.
            dimension_semantics=("parallel",),
        ),
        cost_estimate=pl.CostEstimate(
            flops=4 * NC * L,
            transcendentals=0,
            bytes_accessed=2 * NC * L * itemsize,
        ),
    )(x)

    return out.reshape(N, C, H, W)


def _reference(img):
    # Pure-JAX reference mirroring the PyTorch semantics (for sanity checking).
    l = img
    r = jnp.pad(img, ((0, 0), (0, 0), (0, 0), (0, 1)))[:, :, :, 1:]
    t = img
    b = jnp.pad(img, ((0, 0), (0, 0), (0, 1), (0, 0)))[:, :, 1:, :]
    dx = jnp.abs(r - l)
    dy = jnp.abs(b - t)
    dx = dx.at[:, :, :, -1].set(0)
    dy = dy.at[:, :, -1, :].set(0)
    return dx + dy


if __name__ == "__main__":
    key = jax.random.PRNGKey(0)
    img = jax.random.normal(key, (2, 4, 16, 16), dtype=jnp.float32)

    out = gradient_1d(img)
    jax.block_until_ready(out)

    ref = _reference(img)
    assert out.shape == ref.shape and out.dtype == ref.dtype
    assert jnp.allclose(out, ref, atol=1e-6), "mismatch vs reference"

    print("KERNEL_OK")
</pallas_src>

<mosaic_0001>
module attributes {stable_mosaic.version = 11 : i64} {
  func.func @_gradient_1d_kernel(%arg0: i32, %arg1: memref<8x256xf32, #tpu.memory_space<vmem>>, %arg2: memref<8x256xf32, #tpu.memory_space<vmem>>) attributes {dimension_semantics = [#tpu.dimension_semantics<parallel>], iteration_bounds = array<i64: 1>, scalar_prefetch = 0 : i64, scratch_operands = 0 : i64, tpu.core_type = #tpu.core_type<tc>, window_params = [{transform_indices = @transform_0, window_bounds = array<i64: 8, 256>}, {transform_indices = @transform_1, window_bounds = array<i64: 8, 256>}]} {
    %c0 = arith.constant 0 : index
    %c0_0 = arith.constant 0 : index
    %0 = vector.load %arg1[%c0, %c0_0] : memref<8x256xf32, #tpu.memory_space<vmem>>, vector<8x256xf32>
    %c255_i32 = arith.constant 255 : i32
    %1 = tpu.dynamic_rotate %0 by %c255_i32 dim 1 : vector<8x256xf32>, i32 -> vector<8x256xf32>
    %c240_i32 = arith.constant 240 : i32
    %2 = tpu.dynamic_rotate %0 by %c240_i32 dim 1 : vector<8x256xf32>, i32 -> vector<8x256xf32>
    %3 = arith.subf %1, %0 : vector<8x256xf32>
    %4 = math.absf %3 : vector<8x256xf32>
    %5 = arith.subf %2, %0 : vector<8x256xf32>
    %6 = math.absf %5 : vector<8x256xf32>
    %7 = tpu.iota {dimensions = array<i32: 1>} : vector<1x256xi32>
    %c16_i32 = arith.constant 16 : i32
    %c0_i32 = arith.constant 0 : i32
    %8 = arith.cmpi eq, %c16_i32, %c0_i32 : i32
    %c1_i32 = arith.constant 1 : i32
    %9 = arith.select %8, %c1_i32, %c16_i32 : i32
    %10 = vector.broadcast %9 : i32 to vector<1x256xi32>
    %11 = arith.remsi %7, %10 : vector<1x256xi32>
    %c0_i32_1 = arith.constant 0 : i32
    %12 = vector.broadcast %c0_i32_1 : i32 to vector<1x256xi32>
    %13 = arith.cmpi ne, %11, %12 : vector<1x256xi32>
    %c0_i32_2 = arith.constant 0 : i32
    %14 = vector.broadcast %c0_i32_2 : i32 to vector<1x256xi32>
    %15 = arith.cmpi slt, %11, %14 : vector<1x256xi32>
    %c0_i32_3 = arith.constant 0 : i32
    %16 = arith.cmpi slt, %9, %c0_i32_3 : i32
    %17 = vector.broadcast %16 : i1 to vector<1x256xi1>
    %18 = vector.broadcast %17 : vector<1x256xi1> to vector<1x256xi1>
    %19 = arith.xori %15, %18 : vector<1x256xi1>
    %20 = arith.andi %19, %13 : vector<1x256xi1>
    %21 = vector.broadcast %9 : i32 to vector<1x256xi32>
    %22 = arith.addi %11, %21 : vector<1x256xi32>
    %23 = arith.select %20, %22, %11 : vector<1x256xi1>, vector<1x256xi32>
    %c15_i32 = arith.constant 15 : i32
    %24 = vector.broadcast %c15_i32 : i32 to vector<1x256xi32>
    %25 = arith.cmpi ne, %23, %24 : vector<1x256xi32>
    %26 = arith.extui %25 : vector<1x256xi1> to vector<1x256xi32>
    %27 = arith.sitofp %26 : vector<1x256xi32> to vector<1x256xf32>
    %c240_i32_4 = arith.constant 240 : i32
    %28 = vector.broadcast %c240_i32_4 : i32 to vector<1x256xi32>
    %29 = arith.cmpi slt, %7, %28 : vector<1x256xi32>
    %30 = arith.extui %29 : vector<1x256xi1> to vector<1x256xi32>
    %31 = arith.sitofp %30 : vector<1x256xi32> to vector<1x256xf32>
    %32 = vector.broadcast %27 : vector<1x256xf32> to vector<8x256xf32>
    %33 = arith.mulf %4, %32 : vector<8x256xf32>
    %34 = vector.broadcast %31 : vector<1x256xf32> to vector<8x256xf32>
    %35 = arith.mulf %6, %34 : vector<8x256xf32>
    %36 = arith.addf %33, %35 : vector<8x256xf32>
    %c0_5 = arith.constant 0 : index
    %c0_6 = arith.constant 0 : index
    %37 = vector.load %arg2[%c0_5, %c0_6] : memref<8x256xf32, #tpu.memory_space<vmem>>, vector<8x256xf32>
    tpu.vector_store %arg2[%c0_5, %c0_6], %36 {strides = array<i32>} : memref<8x256xf32, #tpu.memory_space<vmem>>, vector<8x256xf32>,
    return
  }
  func.func @transform_0(%arg0: i32) -> (i32, i32) {
    %c0_i32 = arith.constant 0 : i32
    %c0_i32_0 = arith.constant 0 : i32
    return %arg0, %c0_i32 : i32, i32
  }
  func.func @transform_1(%arg0: i32) -> (i32, i32) {
    %c0_i32 = arith.constant 0 : i32
    %c0_i32_0 = arith.constant 0 : i32
    return %arg0, %c0_i32 : i32, i32
  }
}

</mosaic_0001>

<llo_original>
// kernel: tpu_custom_call.1
$region0: #{tpu_custom_call.1}
  #allocation0 [shape = 'u32[]', space=smem, size = 0x4, offset = 0x4, fixed_abs, tag = 'smem constant byte address 0x4 - core index']
  #allocation1 [shape = 'u32[72,128]{1,0:T(1,128)}', space=vmem, size = 0x9000, scoped, tag = 'internal scratch']
  %s0 = inlined_call_operand.hbm [shape: f32[8,256], index: 0, kind: input, shape index: {}]
  %s1 = inlined_call_operand.hbm [shape: f32[8,256], index: 1, kind: output, shape index: {}]
  %s2 = sld [smem:[#allocation0]]
  $region18: #{tpu_custom_call.1} parent=0
    _
  %s4 = ssub.s32 1, %s2
  %s5 = scalar_select 0, %s4, %s2
  $region1: #{tpu_custom_call.1} parent=0
    #allocation2 [shape = 'u8[8192]{0}', space=vmem, size = 0x2000, scoped, tag = 'input window, operand 0, single buffered']
    #allocation3 [shape = 's32[1]{0}', space=sflag, size = 0x4, scoped, tag = 'scoped memory for tpu_custom_call.1']
    #allocation4 [shape = 's32[1]{0}', space=sflag, size = 0x4, scoped, tag = 'scoped memory for tpu_custom_call.1']
    #allocation5 [shape = 'u8[8192]{0}', space=vmem, size = 0x2000, scoped, tag = 'output window, operand 0, single buffered']
    %6 = vsyncpa [#allocation3], 0
    %7 = vsyncpa [#allocation4], 0
    // Predicated region
    $region2: #{tpu_custom_call.1} parent=1 // pred_check
      _
    $region3: #{tpu_custom_call.1} parent=1 // pred_check_branch
      %9 = sbr.rel (0) target = $region5
    $region4: #{tpu_custom_call.1} parent=1 // pred_region
      %11 = vsyncadd [#allocation3], 0
      %s13 = sshll.u32 %s0, 4
      %s14 = int_to_ptr.hbm [resolvable:$true] %s13
      %s15 = sshll.u32 [#allocation2], 4
      %s16 = int_to_ptr.vmem [resolvable:$true] %s15
      %18 = dma.hbm_to_vmem [thread:$0]  %s14, 256, %s16, [#allocation3]
    $region5: #{tpu_custom_call.1} parent=1 // pred_fallthru
      _
    // Predicated region
    $region6: #{tpu_custom_call.1} parent=1 // pred_check
      _
    $region7: #{tpu_custom_call.1} parent=1 // pred_check_branch
      %20 = sbr.rel (0) target = $region9
    $region8: #{tpu_custom_call.1} parent=1 // pred_region
      %22 = dma.done [#allocation3], 256
    $region9: #{tpu_custom_call.1} parent=1 // pred_fallthru
      _
    %v23 = vld [vmem:[#allocation2] sm:$0xff]
    %v24 = vld [vmem:[#allocation2 + $0x8] sm:$0xff]
    %25 = vrot.lane.b32.xlu0 %v23, 127
    %v26 = vpop.permute.xlu0 %25
    %27 = vrot.lane.b32.xlu0 %v24, 127
    %v28 = vpop.permute.xlu0 %27
    %v29 = vlaneseq
    %v30 = vand.u32 %v29, 127
    %vm31 = vcmp.lt.s32.totalorder %v30, 127
    %v32 = vsel %vm31, %v26, %v28
    %v33 = vsel %vm31, %v28, %v26
    %34 = vrot.lane.b32.xlu0 %v23, 112
    %v35 = vpop.permute.xlu0 %34
    %36 = vrot.lane.b32.xlu0 %v24, 112
    %v37 = vpop.permute.xlu0 %36
    %vm38 = vcmp.lt.s32.totalorder %v30, 112
    %v39 = vsel %vm38, %v35, %v37
    %v40 = vsel %vm38, %v37, %v35
    %v41 = vsub.f32 %v32, %v23
    %v42 = vsub.f32 %v33, %v24
    %v43 = vand.u32 2147483647, %v41
    %v44 = vand.u32 2147483647, %v42
    %v45 = vsub.f32 %v39, %v23
    %v46 = vsub.f32 %v40, %v24
    %v47 = vand.u32 2147483647, %v45
    %v48 = vand.u32 2147483647, %v46
    %v49 = vadd.s32 %v30, 128
    %vm50 = vcmp.lt.s32.totalorder %v30, 0
    %v51 = vsub.s32 0, %v30
    %v52 = vsel %vm50, %v51, %v30
    %v53 = vshrl.u32 %v52, 4
    %v54 = vand.u32 %v52, 15
    %v55 = vsub.s32 0, %v54
    %v56 = vsel %vm50, %v55, %v54
    %vm57 = vcmp.lt.s32.totalorder %v49, 0
    %v58 = vsub.s32 0, %v49
    %v59 = vsel %vm57, %v58, %v49
    %v60 = vshrl.u32 %v59, 4
    %v61 = vand.u32 %v59, 15
    %v62 = vsub.s32 0, %v61
    %v63 = vsel %vm57, %v62, %v61
    %vm64 = vcmp.ne.s32.totalorder %v56, 0
    %vm65 = vcmp.ne.s32.totalorder %v63, 0
    %vm66 = vcmp.lt.s32.totalorder %v56, 0
    %vm67 = vcmp.lt.s32.totalorder %v63, 0
    %vm68 = vmand %vm66, %vm64
    %vm69 = vmand %vm67, %vm65
    %v70 = vadd.s32 %v56, 16
    %v71 = vadd.s32 %v63, 16
    %v72 = vsel %vm68, %v70, %v56
    %v73 = vsel %vm69, %v71, %v63
    %vm74 = vcmp.ne.s32.totalorder %v72, 15
    %vm75 = vcmp.ne.s32.totalorder %v73, 15
    %v76 = vsel %vm74, 1, 0
    %v77 = vsel %vm75, 1, 0
    %v78 = vcvt.s32.f32 %v76
    %v79 = vcvt.s32.f32 %v77
    %vm80 = vcmp.lt.s32.totalorder %v30, 240
    %vm81 = vcmp.lt.s32.totalorder %v49, 240
    %v82 = vsel %vm80, 1, 0
    %v83 = vsel %vm81, 1, 0
    %v84 = vcvt.s32.f32 %v82
    %v85 = vcvt.s32.f32 %v83
    %v86 = vmul.f32 %v43, %v78
    %v87 = vmul.f32 %v44, %v79
    %v88 = vmul.f32 %v47, %v84
    %v89 = vmul.f32 %v48, %v85
    %v90 = vadd.f32 %v86, %v88
    %v91 = vadd.f32 %v87, %v89
    %92 = vst [vmem:[#allocation5] sm:$0xff] %v90
    %93 = vst [vmem:[#allocation5 + $0x8] sm:$0xff] %v91
    // Predicated region
    $region10: #{tpu_custom_call.1} parent=1 // pred_check
      _
    $region11: #{tpu_custom_call.1} parent=1 // pred_check_branch
      %95 = sbr.rel (0) target = $region13
    $region12: #{tpu_custom_call.1} parent=1 // pred_region
      %97 = vsyncadd [#allocation4], 0
      %s99 = sshll.u32 [#allocation5], 4
      %s100 = int_to_ptr.vmem [resolvable:$true] %s99
      %s101 = sshll.u32 %s1, 4
      %s102 = int_to_ptr.hbm [resolvable:$true] %s101
      %104 = dma.vmem_to_hbm [thread:$0]  %s100, 256, %s102, [#allocation4]
    $region13: #{tpu_custom_call.1} parent=1 // pred_fallthru
      _
    // Predicated region
    $region14: #{tpu_custom_call.1} parent=1 // pred_check
      _
    $region15: #{tpu_custom_call.1} parent=1 // pred_check_branch
      %106 = sbr.rel (0) target = $region17
    $region16: #{tpu_custom_call.1} parent=1 // pred_region
      %108 = dma.done [#allocation4], 256
    $region17: #{tpu_custom_call.1} parent=1 // pred_fallthru
      _
    %109 = vsyncpa [#allocation3], 1
    %110 = vsyncpa [#allocation4], 1

</llo_original>
